<compile_context>
chip_gen: v7x
topology: tpu7x:2x2x1
jax: 0.10.0
libtpu: 0.0.40
codegen_flags: <defaults>
</compile_context>

<pallas_src>
import math

import jax
import jax.numpy as jnp
from jax.experimental import pallas as pl
from jax.experimental.pallas import tpu as pltpu


def gcn_dense_kernel(x_ref, adj_ref, wt_ref, b_ref, o_ref, h_ref):
    # h = x @ W^T + b, computed once (grid step 0) and kept resident in VMEM.
    @pl.when(pl.program_id(0) == 0)
    def _():
        h32 = jnp.dot(
            x_ref[...], wt_ref[...], preferred_element_type=jnp.float32
        )
        h_ref[...] = (h32 + b_ref[...]).astype(h_ref.dtype)

    # out_tile = adj_tile @ h   (dense GCN aggregation for this row tile)
    o_ref[...] = jnp.dot(
        adj_ref[...], h_ref[...], preferred_element_type=jnp.float32
    ).astype(o_ref.dtype)


def gcn_conv_dense(x, adj, w, b, *, row_tile=None):
    """out = adj @ (x @ w.T + b), matching GCNConv_dense.forward."""
    N, in_dim = x.shape
    out_dim = w.shape[0]
    assert adj.shape == (N, N)

    # Lane-dense output width (multiple of 128); the extra columns are zeros
    # and get sliced off after the call.
    out_pad = max(128, pl.cdiv(out_dim, 128) * 128)

    # Pre-transpose + zero-pad the weight; pad the bias to match.
    wt = jnp.zeros((in_dim, out_pad), jnp.float32).at[:, :out_dim].set(w.T)
    b2d = (
        jnp.zeros((1, out_pad), jnp.float32)
        .at[:, :out_dim]
        .set(b.reshape(1, out_dim))
    )

    # bf16 matmul inputs for the MXU (f32 accumulation inside the kernel).
    x_bf = x.astype(jnp.bfloat16)
    adj_bf = adj.astype(jnp.bfloat16)
    wt_bf = wt.astype(jnp.bfloat16)

    # Row tile over adj / output.  Must divide N and be a multiple of 8.
    if row_tile is None:
        row_tile = min(N, 512)
    while N % row_tile != 0:
        row_tile //= 2
    assert row_tile >= 8 and row_tile % 8 == 0 and N % row_tile == 0
    n_tiles = N // row_tile

    # Advisory cost estimate for XLA scheduling around the custom call.
    flops = 2 * N * in_dim * out_pad + 2 * N * N * out_pad
    bytes_accessed = (
        x_bf.size * 2 + adj_bf.size * 2 + wt_bf.size * 2
        + b2d.size * 4 + N * out_pad * 4
    )

    out_padded = pl.pallas_call(
        gcn_dense_kernel,
        out_shape=jax.ShapeDtypeStruct((N, out_pad), jnp.float32),
        grid_spec=pltpu.PrefetchScalarGridSpec(
            num_scalar_prefetch=0,
            grid=(n_tiles,),
            in_specs=[
                pl.BlockSpec((N, in_dim), lambda i: (0, 0)),        # x (whole)
                pl.BlockSpec((row_tile, N), lambda i: (i, 0)),      # adj row tile
                pl.BlockSpec((in_dim, out_pad), lambda i: (0, 0)),  # W^T (whole)
                pl.BlockSpec((1, out_pad), lambda i: (0, 0)),       # bias
            ],
            out_specs=pl.BlockSpec((row_tile, out_pad), lambda i: (i, 0)),
            scratch_shapes=[pltpu.VMEM((N, out_pad), jnp.bfloat16)],  # h
        ),
        compiler_params=pltpu.CompilerParams(
            # h scratch is written at step 0 and read by later steps, so the
            # row axis must stay sequential.
            dimension_semantics=("arbitrary",),
            # Plenty at these sizes and safe on v7x's 64 MiB VMEM; raise only
            # if row_tile * N grows enough to need it.
            vmem_limit_bytes=32 << 20,
        ),
        cost_estimate=pl.CostEstimate(
            flops=flops, transcendentals=0, bytes_accessed=bytes_accessed
        ),
    )(x_bf, adj_bf, wt_bf, b2d)

    return out_padded[:, :out_dim]


if __name__ == "__main__":
    # Small, deterministic problem consistent with the module:
    # N nodes, in_dim -> out_dim GCN layer.
    N, in_dim, out_dim = 128, 64, 32

    key = jax.random.PRNGKey(0)
    kx, kadj, kw, kb = jax.random.split(key, 4)

    x = jax.random.normal(kx, (N, in_dim), dtype=jnp.float32)

    # symmetric dense adjacency with self-loops (typical dense-GCN input)
    a = jax.random.uniform(kadj, (N, N), dtype=jnp.float32)
    adj = ((a + a.T) * 0.5 > 0.9).astype(jnp.float32) + jnp.eye(N, dtype=jnp.float32)

    # nn.Linear default init: U(-1/sqrt(in_dim), 1/sqrt(in_dim)) for W and b.
    bound = 1.0 / math.sqrt(in_dim)
    w = jax.random.uniform(
        kw, (out_dim, in_dim), minval=-bound, maxval=bound, dtype=jnp.float32
    )
    b = jax.random.uniform(
        kb, (out_dim,), minval=-bound, maxval=bound, dtype=jnp.float32
    )

    out = jax.block_until_ready(gcn_conv_dense(x, adj, w, b))

    # sanity check against plain-JAX f32 reference; tolerance loosened because
    # the kernel feeds the MXU bf16 inputs (with f32 accumulation).
    ref = adj @ (x @ w.T + b)
    assert out.shape == (N, out_dim)
    assert jnp.allclose(out, ref, atol=5e-2, rtol=5e-2), float(
        jnp.max(jnp.abs(out - ref))
    )

    print("KERNEL_OK")
</pallas_src>

<mosaic_0001>
module attributes {stable_mosaic.version = 11 : i64} {
  func.func @gcn_dense_kernel(%arg0: i32, %arg1: memref<128x64xbf16, #tpu.memory_space<vmem>>, %arg2: memref<128x128xbf16, #tpu.memory_space<vmem>>, %arg3: memref<64x128xbf16, #tpu.memory_space<vmem>>, %arg4: memref<1x128xf32, #tpu.memory_space<vmem>>, %arg5: memref<128x128xf32, #tpu.memory_space<vmem>>, %arg6: memref<128x128xbf16, #tpu.memory_space<vmem>>) attributes {dimension_semantics = [#tpu.dimension_semantics<arbitrary>], iteration_bounds = array<i64: 1>, scalar_prefetch = 0 : i64, scratch_operands = 1 : i64, tpu.core_type = #tpu.core_type<tc>, window_params = [{pipeline_mode = #tpu.pipeline_mode<synchronous>, transform_indices = @transform_0, window_bounds = array<i64: 128, 64>}, {transform_indices = @transform_1, window_bounds = array<i64: 128, 128>}, {pipeline_mode = #tpu.pipeline_mode<synchronous>, transform_indices = @transform_2, window_bounds = array<i64: 64, 128>}, {pipeline_mode = #tpu.pipeline_mode<synchronous>, transform_indices = @transform_3, window_bounds = array<i64: 1, 128>}, {transform_indices = @transform_4, window_bounds = array<i64: 128, 128>}]} {
    %c0_i32 = arith.constant 0 : i32
    %0 = arith.cmpi eq, %arg0, %c0_i32 : i32
    %1 = arith.extui %0 : i1 to i32
    %c0_i32_0 = arith.constant 0 : i32
    %2 = arith.cmpi ne, %1, %c0_i32_0 : i32
    scf.if %2 {
      %c0_6 = arith.constant 0 : index
      %c0_7 = arith.constant 0 : index
      %7 = vector.load %arg1[%c0_6, %c0_7] : memref<128x64xbf16, #tpu.memory_space<vmem>>, vector<128x64xbf16>
      %c0_8 = arith.constant 0 : index
      %c0_9 = arith.constant 0 : index
      %8 = vector.load %arg3[%c0_8, %c0_9] : memref<64x128xbf16, #tpu.memory_space<vmem>>, vector<64x128xbf16>
      %cst_10 = arith.constant dense<0.000000e+00> : vector<128x128xf32>
      %9 = tpu.matmul %7, %8, %cst_10 {dimension_numbers = #tpu.dot_dimension_numbers<[1], [0], [0], [1], [0, 0, 1, 1], [], []>} : vector<128x64xbf16>, vector<64x128xbf16>, vector<128x128xf32> -> vector<128x128xf32>
      %c0_11 = arith.constant 0 : index
      %c0_12 = arith.constant 0 : index
      %10 = vector.load %arg4[%c0_11, %c0_12] : memref<1x128xf32, #tpu.memory_space<vmem>>, vector<1x128xf32>
      %11 = vector.broadcast %10 : vector<1x128xf32> to vector<128x128xf32>
      %12 = arith.addf %9, %11 : vector<128x128xf32>
      %13 = arith.truncf %12 : vector<128x128xf32> to vector<128x128xbf16>
      %c0_13 = arith.constant 0 : index
      %c0_14 = arith.constant 0 : index
      %14 = vector.load %arg6[%c0_13, %c0_14] : memref<128x128xbf16, #tpu.memory_space<vmem>>, vector<128x128xbf16>
      tpu.vector_store %arg6[%c0_13, %c0_14], %13 {strides = array<i32>} : memref<128x128xbf16, #tpu.memory_space<vmem>>, vector<128x128xbf16>,
    } else {
    }
    %c0 = arith.constant 0 : index
    %c0_1 = arith.constant 0 : index
    %3 = vector.load %arg2[%c0, %c0_1] : memref<128x128xbf16, #tpu.memory_space<vmem>>, vector<128x128xbf16>
    %c0_2 = arith.constant 0 : index
    %c0_3 = arith.constant 0 : index
    %4 = vector.load %arg6[%c0_2, %c0_3] : memref<128x128xbf16, #tpu.memory_space<vmem>>, vector<128x128xbf16>
    %cst = arith.constant dense<0.000000e+00> : vector<128x128xf32>
    %5 = tpu.matmul %3, %4, %cst {dimension_numbers = #tpu.dot_dimension_numbers<[1], [0], [0], [1], [0, 0, 1, 1], [], []>} : vector<128x128xbf16>, vector<128x128xbf16>, vector<128x128xf32> -> vector<128x128xf32>
    %c0_4 = arith.constant 0 : index
    %c0_5 = arith.constant 0 : index
    %6 = vector.load %arg5[%c0_4, %c0_5] : memref<128x128xf32, #tpu.memory_space<vmem>>, vector<128x128xf32>
    tpu.vector_store %arg5[%c0_4, %c0_5], %5 {strides = array<i32>} : memref<128x128xf32, #tpu.memory_space<vmem>>, vector<128x128xf32>,
    return
  }
  func.func @transform_0(%arg0: i32) -> (i32, i32) {
    %c0_i32 = arith.constant 0 : i32
    %c0_i32_0 = arith.constant 0 : i32
    %c0_i32_1 = arith.constant 0 : i32
    return %c0_i32, %c0_i32_0 : i32, i32
  }
  func.func @transform_1(%arg0: i32) -> (i32, i32) {
    %c0_i32 = arith.constant 0 : i32
    %c0_i32_0 = arith.constant 0 : i32
    return %arg0, %c0_i32 : i32, i32
  }
  func.func @transform_2(%arg0: i32) -> (i32, i32) {
    %c0_i32 = arith.constant 0 : i32
    %c0_i32_0 = arith.constant 0 : i32
    %c0_i32_1 = arith.constant 0 : i32
    return %c0_i32, %c0_i32_0 : i32, i32
  }
  func.func @transform_3(%arg0: i32) -> (i32, i32) {
    %c0_i32 = arith.constant 0 : i32
    %c0_i32_0 = arith.constant 0 : i32
    %c0_i32_1 = arith.constant 0 : i32
    return %c0_i32, %c0_i32_0 : i32, i32
  }
  func.func @transform_4(%arg0: i32) -> (i32, i32) {
    %c0_i32 = arith.constant 0 : i32
    %c0_i32_0 = arith.constant 0 : i32
    return %arg0, %c0_i32 : i32, i32
  }
}

</mosaic_0001>

<llo_original>
// kernel: tpu_custom_call.1
$region0: #{tpu_custom_call.1}
  #allocation0 [shape = 'u32[]', space=smem, size = 0x4, offset = 0x4, fixed_abs, tag = 'smem constant byte address 0x4 - core index']
  #allocation1 [shape = 'u32[144,128]{1,0:T(1,128)}', space=vmem, size = 0x12000, scoped, tag = 'internal scratch']
  #allocation2 [shape = 'bf16[128,128]{1,0:T(16,128)(2,1)}', space=vmem, size = 0x8000, scoped, tag = 'scratch operand']
  %s0 = inlined_call_operand.vmem [shape: bf16[128,64], index: 0, kind: input, shape index: {}]
  %s1 = inlined_call_operand.vmem [shape: bf16[128,128], index: 1, kind: input, shape index: {}]
  %s2 = inlined_call_operand.vmem [shape: bf16[64,128], index: 2, kind: input, shape index: {}]
  %s3 = inlined_call_operand.vmem [shape: f32[1,128], index: 3, kind: input, shape index: {}]
  %s4 = inlined_call_operand.hbm [shape: f32[128,128], index: 4, kind: output, shape index: {}]
  %s5 = sld [smem:[#allocation0]]
  $region30: #{tpu_custom_call.1} parent=0
    _
  %s7 = ssub.s32 1, %s5
  %s8 = scalar_select 0, %s7, %s5
  $region1: #{tpu_custom_call.1} parent=0
    #allocation3 [shape = 'u8[65536]{0}', space=vmem, size = 0x10000, scoped, tag = 'output window, operand 0, single buffered']
    #allocation4 [shape = 's32[1]{0}', space=sflag, size = 0x4, scoped, tag = 'scoped memory for tpu_custom_call.1']
    %9 = vsyncpa [#allocation4], 0
    // Predicated region
    $region2: #{tpu_custom_call.1} parent=1 // pred_check
      _
    $region3: #{tpu_custom_call.1} parent=1 // pred_check_branch
      %11 = sbr.rel (0) target = $region5
    $region4: #{tpu_custom_call.1} parent=1 // pred_region
      _
    $region5: #{tpu_custom_call.1} parent=1 // pred_fallthru
      _
    // Predicated region
    $region6: #{tpu_custom_call.1} parent=1 // pred_check
      _
    $region7: #{tpu_custom_call.1} parent=1 // pred_check_branch
      %13 = sbr.rel (0) target = $region9
    $region8: #{tpu_custom_call.1} parent=1 // pred_region
      _
    $region9: #{tpu_custom_call.1} parent=1 // pred_fallthru
      _
    // Predicated region
    $region10: #{tpu_custom_call.1} parent=1 // pred_check
      _
    $region11: #{tpu_custom_call.1} parent=1 // pred_check_branch
      %15 = sbr.rel (0) target = $region13
    $region12: #{tpu_custom_call.1} parent=1 // pred_region
      _
    $region13: #{tpu_custom_call.1} parent=1 // pred_fallthru
      _
    // Predicated region
    $region14: #{tpu_custom_call.1} parent=1 // pred_check
      _
    $region15: #{tpu_custom_call.1} parent=1 // pred_check_branch
      %17 = sbr.rel (0) target = $region17
    $region16: #{tpu_custom_call.1} parent=1 // pred_region
      _
    $region17: #{tpu_custom_call.1} parent=1 // pred_fallthru
      _
    %p19 = scmp.eq.s32.totalorder 0, 0
    // Predicated region
    $region18: #{tpu_custom_call.1} parent=1 // pred_check
      %p20 = pneg %p19
    $region19: #{tpu_custom_call.1} parent=1 // pred_check_branch
      %22 = sbr.rel (%p20) target = $region21
    $region20: #{tpu_custom_call.1} parent=1 // pred_region
      %v23 = vld [vmem:[%s0] sm:$0xf]
      %v24 = vld [vmem:[%s0 + $0x4] sm:$0xf]
      %v25 = vld [vmem:[%s0 + $0x8] sm:$0xf]
      %v26 = vld [vmem:[%s0 + $0xc] sm:$0xf]
      %v27 = vld [vmem:[%s0 + $0x10] sm:$0xf]
      %v28 = vld [vmem:[%s0 + $0x14] sm:$0xf]
      %v29 = vld [vmem:[%s0 + $0x18] sm:$0xf]
      %v30 = vld [vmem:[%s0 + $0x1c] sm:$0xf]
      %v31 = vld [vmem:[%s0 + $0x20] sm:$0xf]
      %v32 = vld [vmem:[%s0 + $0x24] sm:$0xf]
      %v33 = vld [vmem:[%s0 + $0x28] sm:$0xf]
      %v34 = vld [vmem:[%s0 + $0x2c] sm:$0xf]
      %v35 = vld [vmem:[%s0 + $0x30] sm:$0xf]
      %v36 = vld [vmem:[%s0 + $0x34] sm:$0xf]
      %v37 = vld [vmem:[%s0 + $0x38] sm:$0xf]
      %v38 = vld [vmem:[%s0 + $0x3c] sm:$0xf]
      %v39 = vld [vmem:[%s2] sm:$0xf]
      %v40 = vld [vmem:[%s2 + $0x4] sm:$0xf]
      %v41 = vld [vmem:[%s2 + $0x8] sm:$0xf]
      %v42 = vld [vmem:[%s2 + $0xc] sm:$0xf]
      %v43 = vld [vmem:[%s2 + $0x10] sm:$0xf]
      %v44 = vld [vmem:[%s2 + $0x14] sm:$0xf]
      %v45 = vld [vmem:[%s2 + $0x18] sm:$0xf]
      %v46 = vld [vmem:[%s2 + $0x1c] sm:$0xf]
      %v47 = vld [vmem:[%s3] sm:$0x1]
      %v49 = vlaneseq
      %v50 = vshrl.u32 %v49, 7
      %v51 = vsub.s32 0, %v50
      %v52 = vrot.slane %v47, %v51
      %v70 = vunpack.c.l.b16 %v23
      %v71 = vunpack.c.l.b16 %v24
      %v72 = vunpack.c.l.b16 %v25
      %v73 = vunpack.c.l.b16 %v26
      %v74 = vunpack.c.l.b16 %v27
      %v75 = vunpack.c.l.b16 %v28
      %v76 = vunpack.c.l.b16 %v29
      %v77 = vunpack.c.l.b16 %v30
      %v78 = vunpack.c.l.b16 %v31
      %v79 = vunpack.c.l.b16 %v32
      %v80 = vunpack.c.l.b16 %v33
      %v81 = vunpack.c.l.b16 %v34
      %v82 = vunpack.c.l.b16 %v35
      %v83 = vunpack.c.l.b16 %v36
      %v84 = vunpack.c.l.b16 %v37
      %v85 = vunpack.c.l.b16 %v38
      %v86 = vpack.c.b16 %v71, %v70
      %v87 = vpack.c.b16 %v73, %v72
      %v88 = vpack.c.b16 %v75, %v74
      %v89 = vpack.c.b16 %v77, %v76
      %v90 = vpack.c.b16 %v79, %v78
      %v91 = vpack.c.b16 %v81, %v80
      %v92 = vpack.c.b16 %v83, %v82
      %v93 = vpack.c.b16 %v85, %v84
      %v102 = vunpack.c.l.b16 %v39
      %v103 = vunpack.c.l.b16 %v40
      %v104 = vunpack.c.l.b16 %v41
      %v105 = vunpack.c.l.b16 %v42
      %v106 = vunpack.c.l.b16 %v43
      %v107 = vunpack.c.l.b16 %v44
      %v108 = vunpack.c.l.b16 %v45
      %v109 = vunpack.c.l.b16 %v46
      %v110 = vpack.c.b16 %v103, %v102
      %v111 = vpack.c.b16 %v105, %v104
      %v112 = vpack.c.b16 %v107, %v106
      %v113 = vpack.c.b16 %v109, %v108
      %vm118 = vcmask 523264
      %v120 = vsel %vm118, %v86, 0
      %v123 = vsel %vm118, %v87, 0
      %v126 = vsel %vm118, %v88, 0
      %v129 = vsel %vm118, %v89, 0
      %v132 = vsel %vm118, %v90, 0
      %v135 = vsel %vm118, %v91, 0
      %v138 = vsel %vm118, %v92, 0
      %v141 = vsel %vm118, %v93, 0
      %143 = vmatprep.subr.bf16.mxu0 0
      %144 = vmatpush1.bf16.msra.mxu0 %v110
      %145 = vmatprep.subr.bf16.mxu0 0
      %146 = vmatpush1.bf16.msra.mxu0 %v111
      %147 = vmatprep.subr.bf16.mxu0 0
      %148 = vmatpush1.bf16.msra.mxu0 %v112
      %149 = vmatprep.subr.bf16.mxu0 0
      %150 = vmatpush1.bf16.msra.mxu0 %v113
      %151 = vmatprep.subr.bf16.mxu0 0
      %152 = vmatpush1.bf16.msra.mxu0 0
      %153 = vmatprep.subr.bf16.mxu0 0
      %154 = vmatpush1.bf16.msra.mxu0 0
      %155 = vmatprep.subr.bf16.mxu0 0
      %156 = vmatpush1.bf16.msra.mxu0 0
      %157 = vmatprep.subr.bf16.mxu0 0
      %158 = vmatpush1.bf16.msra.mxu0 0
      %159 = vmatprep.subr.bf16.mxu0 0
      %160 = vmatpush1.bf16.msra.mxu0 0
      %161 = vmatprep.subr.bf16.mxu0 0
      %162 = vmatpush1.bf16.msra.mxu0 0
      %163 = vmatprep.subr.bf16.mxu0 0
      %164 = vmatpush1.bf16.msra.mxu0 0
      %165 = vmatprep.subr.bf16.mxu0 0
      %166 = vmatpush1.bf16.msra.mxu0 0
      %167 = vmatprep.subr.bf16.mxu0 0
      %168 = vmatpush1.bf16.msra.mxu0 0
      %169 = vmatprep.subr.bf16.mxu0 0
      %170 = vmatpush1.bf16.msra.mxu0 0
      %171 = vmatprep.subr.bf16.mxu0 0
      %172 = vmatpush1.bf16.msra.mxu0 0
      %173 = vmatprep.subr.bf16.mxu0 0
      %174 = vmatpush1.bf16.msra.mxu0 0
      %175 = vmatprep.mubr.bf16.mxu0 0
      %176 = vmatmul.mubr.bf16.gmra.mrb[0].mxu0 %v120
      %v177 = vpop.f32.mrb[0].mxu0
      %v178 = vadd.f32 %v52, %v177
      %v179 = vpop.f32.mrb[0].mxu0
      %v180 = vpop.f32.mrb[0].mxu0
      %v181 = vadd.f32 %v52, %v180
      %v182 = vpop.f32.mrb[0].mxu0
      %183 = vmatprep.mubr.bf16.mxu0 0
      %184 = vmatmul.mubr.bf16.gmra.mrb[0].mxu0 %v123
      %v185 = vpop.f32.mrb[0].mxu0
      %v186 = vadd.f32 %v52, %v185
      %v187 = vpop.f32.mrb[0].mxu0
      %v188 = vpop.f32.mrb[0].mxu0
      %v189 = vadd.f32 %v52, %v188
      %v190 = vpop.f32.mrb[0].mxu0
      %191 = vmatprep.mubr.bf16.mxu0 0
      %192 = vmatmul.mubr.bf16.gmra.mrb[0].mxu0 %v126
      %v193 = vpop.f32.mrb[0].mxu0
      %v194 = vadd.f32 %v52, %v193
      %v195 = vpop.f32.mrb[0].mxu0
      %v196 = vpop.f32.mrb[0].mxu0
      %v197 = vadd.f32 %v52, %v196
      %v198 = vpop.f32.mrb[0].mxu0
      %199 = vmatprep.mubr.bf16.mxu0 0
      %200 = vmatmul.mubr.bf16.gmra.mrb[0].mxu0 %v129
      %v201 = vpop.f32.mrb[0].mxu0
      %v202 = vadd.f32 %v52, %v201
      %v203 = vpop.f32.mrb[0].mxu0
      %v204 = vpop.f32.mrb[0].mxu0
      %v205 = vadd.f32 %v52, %v204
      %v206 = vpop.f32.mrb[0].mxu0
      %207 = vmatprep.mubr.bf16.mxu0 0
      %208 = vmatmul.mubr.bf16.gmra.mrb[0].mxu0 %v132
      %v209 = vpop.f32.mrb[0].mxu0
      %v210 = vadd.f32 %v52, %v209
      %v211 = vpop.f32.mrb[0].mxu0
      %v212 = vpop.f32.mrb[0].mxu0
      %v213 = vadd.f32 %v52, %v212
      %v214 = vpop.f32.mrb[0].mxu0
      %215 = vmatprep.mubr.bf16.mxu0 0
      %216 = vmatmul.mubr.bf16.gmra.mrb[0].mxu0 %v135
      %v217 = vpop.f32.mrb[0].mxu0
      %v218 = vadd.f32 %v52, %v217
      %v219 = vpop.f32.mrb[0].mxu0
      %v220 = vpop.f32.mrb[0].mxu0
      %v221 = vadd.f32 %v52, %v220
      %v222 = vpop.f32.mrb[0].mxu0
      %223 = vmatprep.mubr.bf16.mxu0 0
      %224 = vmatmul.mubr.bf16.gmra.mrb[0].mxu0 %v138
      %v225 = vpop.f32.mrb[0].mxu0
      %v226 = vadd.f32 %v52, %v225
      %v227 = vpop.f32.mrb[0].mxu0
      %v228 = vpop.f32.mrb[0].mxu0
      %v229 = vadd.f32 %v52, %v228
      %v230 = vpop.f32.mrb[0].mxu0
      %231 = vmatprep.mubr.bf16.mxu0 0
      %232 = vmatmul.mubr.bf16.gmra.mrb[0].mxu0 %v141
      %v233 = vpop.f32.mrb[0].mxu0
      %v234 = vadd.f32 %v52, %v233
      %v235 = vpop.f32.mrb[0].mxu0
      %v236 = vpop.f32.mrb[0].mxu0
      %v237 = vadd.f32 %v52, %v236
      %v238 = vpop.f32.mrb[0].mxu0
      %239 = vdwg.mxu0
      %v240 = vpack.c.bf16 %v181, %v178
      %v241 = vpack.c.bf16 %v189, %v186
      %v242 = vpack.c.bf16 %v197, %v194
      %v243 = vpack.c.bf16 %v205, %v202
      %v244 = vpack.c.bf16 %v213, %v210
      %v245 = vpack.c.bf16 %v221, %v218
      %v246 = vpack.c.bf16 %v229, %v226
      %v247 = vpack.c.bf16 %v237, %v234
      %248 = vst [vmem:[#allocation2] sm:$0xff] %v240
      %249 = vst [vmem:[#allocation2 + $0x8] sm:$0xff] %v241
      %250 = vst [vmem:[#allocation2 + $0x10] sm:$0xff] %v242
      %251 = vst [vmem:[#allocation2 + $0x18] sm:$0xff] %v243
      %252 = vst [vmem:[#allocation2 + $0x20] sm:$0xff] %v244
      %253 = vst [vmem:[#allocation2 + $0x28] sm:$0xff] %v245
      %254 = vst [vmem:[#allocation2 + $0x30] sm:$0xff] %v246
      %255 = vst [vmem:[#allocation2 + $0x38] sm:$0xff] %v247
    $region21: #{tpu_custom_call.1} parent=1 // pred_fallthru
      _
    %v256 = vld [vmem:[%s1] sm:$0xf]
    %v257 = vld [vmem:[%s1 + $0x4] sm:$0xf]
    %v258 = vld [vmem:[%s1 + $0x8] sm:$0xf]
    %v259 = vld [vmem:[%s1 + $0xc] sm:$0xf]
    %v260 = vld [vmem:[%s1 + $0x10] sm:$0xf]
    %v261 = vld [vmem:[%s1 + $0x14] sm:$0xf]
    %v262 = vld [vmem:[%s1 + $0x18] sm:$0xf]
    %v263 = vld [vmem:[%s1 + $0x1c] sm:$0xf]
    %v264 = vld [vmem:[%s1 + $0x20] sm:$0xf]
    %v265 = vld [vmem:[%s1 + $0x24] sm:$0xf]
    %v266 = vld [vmem:[%s1 + $0x28] sm:$0xf]
    %v267 = vld [vmem:[%s1 + $0x2c] sm:$0xf]
    %v268 = vld [vmem:[%s1 + $0x30] sm:$0xf]
    %v269 = vld [vmem:[%s1 + $0x34] sm:$0xf]
    %v270 = vld [vmem:[%s1 + $0x38] sm:$0xf]
    %v271 = vld [vmem:[%s1 + $0x3c] sm:$0xf]
    %v272 = vld [vmem:[#allocation2] sm:$0xff]
    %v273 = vld [vmem:[#allocation2 + $0x8] sm:$0xff]
    %v274 = vld [vmem:[#allocation2 + $0x10] sm:$0xff]
    %v275 = vld [vmem:[#allocation2 + $0x18] sm:$0xff]
    %v276 = vld [vmem:[#allocation2 + $0x20] sm:$0xff]
    %v277 = vld [vmem:[#allocation2 + $0x28] sm:$0xff]
    %v278 = vld [vmem:[#allocation2 + $0x30] sm:$0xff]
    %v279 = vld [vmem:[#allocation2 + $0x38] sm:$0xff]
    %v296 = vunpack.c.l.b16 %v256
    %v297 = vunpack.c.l.b16 %v257
    %v298 = vunpack.c.l.b16 %v258
    %v299 = vunpack.c.l.b16 %v259
    %v300 = vunpack.c.l.b16 %v260
    %v301 = vunpack.c.l.b16 %v261
    %v302 = vunpack.c.l.b16 %v262
    %v303 = vunpack.c.l.b16 %v263
    %v304 = vunpack.c.l.b16 %v264
    %v305 = vunpack.c.l.b16 %v265
    %v306 = vunpack.c.l.b16 %v266
    %v307 = vunpack.c.l.b16 %v267
    %v308 = vunpack.c.l.b16 %v268
    %v309 = vunpack.c.l.b16 %v269
    %v310 = vunpack.c.l.b16 %v270
    %v311 = vunpack.c.l.b16 %v271
    %v312 = vpack.c.b16 %v297, %v296
    %v313 = vpack.c.b16 %v299, %v298
    %v314 = vpack.c.b16 %v301, %v300
    %v315 = vpack.c.b16 %v303, %v302
    %v316 = vpack.c.b16 %v305, %v304
    %v317 = vpack.c.b16 %v307, %v306
    %v318 = vpack.c.b16 %v309, %v308
    %v319 = vpack.c.b16 %v311, %v310
    %328 = vmatprep.subr.bf16.mxu0 0
    %329 = vmatpush1.bf16.msra.mxu0 %v272
    %330 = vmatprep.subr.bf16.mxu0 0
    %331 = vmatpush1.bf16.msra.mxu0 %v273
    %332 = vmatprep.subr.bf16.mxu0 0
    %333 = vmatpush1.bf16.msra.mxu0 %v274
    %334 = vmatprep.subr.bf16.mxu0 0
    %335 = vmatpush1.bf16.msra.mxu0 %v275
    %336 = vmatprep.subr.bf16.mxu0 0
    %337 = vmatpush1.bf16.msra.mxu0 %v276
    %338 = vmatprep.subr.bf16.mxu0 0
    %339 = vmatpush1.bf16.msra.mxu0 %v277
    %340 = vmatprep.subr.bf16.mxu0 0
    %341 = vmatpush1.bf16.msra.mxu0 %v278
    %342 = vmatprep.subr.bf16.mxu0 0
    %343 = vmatpush1.bf16.msra.mxu0 %v279
    %344 = vmatprep.subr.bf16.mxu0 0
    %345 = vmatpush1.bf16.msra.mxu0 0
    %346 = vmatprep.subr.bf16.mxu0 0
    %347 = vmatpush1.bf16.msra.mxu0 0
    %348 = vmatprep.subr.bf16.mxu0 0
    %349 = vmatpush1.bf16.msra.mxu0 0
    %350 = vmatprep.subr.bf16.mxu0 0
    %351 = vmatpush1.bf16.msra.mxu0 0
    %352 = vmatprep.subr.bf16.mxu0 0
    %353 = vmatpush1.bf16.msra.mxu0 0
    %354 = vmatprep.subr.bf16.mxu0 0
    %355 = vmatpush1.bf16.msra.mxu0 0
    %356 = vmatprep.subr.bf16.mxu0 0
    %357 = vmatpush1.bf16.msra.mxu0 0
    %358 = vmatprep.subr.bf16.mxu0 0
    %359 = vmatpush1.bf16.msra.mxu0 0
    %360 = vmatprep.mubr.bf16.mxu0 0
    %361 = vmatmul.mubr.bf16.gmra.mrb[0].mxu0 %v312
    %v362 = vpop.f32.mrb[0].mxu0
    %v363 = vadd.f32 0.0, %v362
    %v364 = vpop.f32.mrb[0].mxu0
    %v365 = vpop.f32.mrb[0].mxu0
    %v366 = vadd.f32 0.0, %v365
    %v367 = vpop.f32.mrb[0].mxu0
    %368 = vmatprep.mubr.bf16.mxu0 0
    %369 = vmatmul.mubr.bf16.gmra.mrb[0].mxu0 %v313
    %v370 = vpop.f32.mrb[0].mxu0
    %v371 = vadd.f32 0.0, %v370
    %v372 = vpop.f32.mrb[0].mxu0
    %v373 = vpop.f32.mrb[0].mxu0
    %v374 = vadd.f32 0.0, %v373
    %v375 = vpop.f32.mrb[0].mxu0
    %376 = vmatprep.mubr.bf16.mxu0 0
    %377 = vmatmul.mubr.bf16.gmra.mrb[0].mxu0 %v314
    %v378 = vpop.f32.mrb[0].mxu0
    %v379 = vadd.f32 0.0, %v378
    %v380 = vpop.f32.mrb[0].mxu0
    %v381 = vpop.f32.mrb[0].mxu0
    %v382 = vadd.f32 0.0, %v381
    %v383 = vpop.f32.mrb[0].mxu0
    %384 = vmatprep.mubr.bf16.mxu0 0
    %385 = vmatmul.mubr.bf16.gmra.mrb[0].mxu0 %v315
    %v386 = vpop.f32.mrb[0].mxu0
    %v387 = vadd.f32 0.0, %v386
    %v388 = vpop.f32.mrb[0].mxu0
    %v389 = vpop.f32.mrb[0].mxu0
    %v390 = vadd.f32 0.0, %v389
    %v391 = vpop.f32.mrb[0].mxu0
    %392 = vmatprep.mubr.bf16.mxu0 0
    %393 = vmatmul.mubr.bf16.gmra.mrb[0].mxu0 %v316
    %v394 = vpop.f32.mrb[0].mxu0
    %v395 = vadd.f32 0.0, %v394
    %v396 = vpop.f32.mrb[0].mxu0
    %v397 = vpop.f32.mrb[0].mxu0
    %v398 = vadd.f32 0.0, %v397
    %v399 = vpop.f32.mrb[0].mxu0
    %400 = vmatprep.mubr.bf16.mxu0 0
    %401 = vmatmul.mubr.bf16.gmra.mrb[0].mxu0 %v317
    %v402 = vpop.f32.mrb[0].mxu0
    %v403 = vadd.f32 0.0, %v402
    %v404 = vpop.f32.mrb[0].mxu0
    %v405 = vpop.f32.mrb[0].mxu0
    %v406 = vadd.f32 0.0, %v405
    %v407 = vpop.f32.mrb[0].mxu0
    %408 = vmatprep.mubr.bf16.mxu0 0
    %409 = vmatmul.mubr.bf16.gmra.mrb[0].mxu0 %v318
    %v410 = vpop.f32.mrb[0].mxu0
    %v411 = vadd.f32 0.0, %v410
    %v412 = vpop.f32.mrb[0].mxu0
    %v413 = vpop.f32.mrb[0].mxu0
    %v414 = vadd.f32 0.0, %v413
    %v415 = vpop.f32.mrb[0].mxu0
    %416 = vmatprep.mubr.bf16.mxu0 0
    %417 = vmatmul.mubr.bf16.gmra.mrb[0].mxu0 %v319
    %v418 = vpop.f32.mrb[0].mxu0
    %v419 = vadd.f32 0.0, %v418
    %v420 = vpop.f32.mrb[0].mxu0
    %v421 = vpop.f32.mrb[0].mxu0
    %v422 = vadd.f32 0.0, %v421
    %v423 = vpop.f32.mrb[0].mxu0
    %424 = vdwg.mxu0
    %425 = vst [vmem:[#allocation3] sm:$0xff] %v363
    %426 = vst [vmem:[#allocation3 + $0x8] sm:$0xff] %v366
    %427 = vst [vmem:[#allocation3 + $0x10] sm:$0xff] %v371
    %428 = vst [vmem:[#allocation3 + $0x18] sm:$0xff] %v374
    %429 = vst [vmem:[#allocation3 + $0x20] sm:$0xff] %v379
    %430 = vst [vmem:[#allocation3 + $0x28] sm:$0xff] %v382
    %431 = vst [vmem:[#allocation3 + $0x30] sm:$0xff] %v387
    %432 = vst [vmem:[#allocation3 + $0x38] sm:$0xff] %v390
    %433 = vst [vmem:[#allocation3 + $0x40] sm:$0xff] %v395
    %434 = vst [vmem:[#allocation3 + $0x48] sm:$0xff] %v398
    %435 = vst [vmem:[#allocation3 + $0x50] sm:$0xff] %v403
    %436 = vst [vmem:[#allocation3 + $0x58] sm:$0xff] %v406
    %437 = vst [vmem:[#allocation3 + $0x60] sm:$0xff] %v411
    %438 = vst [vmem:[#allocation3 + $0x68] sm:$0xff] %v414
    %439 = vst [vmem:[#allocation3 + $0x70] sm:$0xff] %v419
    %440 = vst [vmem:[#allocation3 + $0x78] sm:$0xff] %v422
    // Predicated region
    $region22: #{tpu_custom_call.1} parent=1 // pred_check
      _
    $region23: #{tpu_custom_call.1} parent=1 // pred_check_branch
      %442 = sbr.rel (0) target = $region25
    $region24: #{tpu_custom_call.1} parent=1 // pred_region
      %s444 = ssub.s32 2048, 2048
      %445 = vsyncadd [#allocation4], %s444
      %s446 = sshll.u32 [#allocation3], 4
      %s447 = int_to_ptr.vmem [resolvable:$true] %s446
      %452 = dma.vmem_to_hbm [thread:$0]  %s447, 2048, %s4, [#allocation4], 128, 128, 8
    $region25: #{tpu_custom_call.1} parent=1 // pred_fallthru
      _
    // Predicated region
    $region26: #{tpu_custom_call.1} parent=1 // pred_check
      _
    $region27: #{tpu_custom_call.1} parent=1 // pred_check_branch
      %454 = sbr.rel (0) target = $region29
    $region28: #{tpu_custom_call.1} parent=1 // pred_region
      %455 = dma.done [#allocation4], 2048
    $region29: #{tpu_custom_call.1} parent=1 // pred_fallthru
      _
    %456 = vsyncpa [#allocation4], 1

</llo_original>
